<compile_context>
chip_gen: v7x
topology: tpu7x:2x2x1
jax: 0.10.0
libtpu: 0.0.40
codegen_flags: <defaults>
</compile_context>

<pallas_src>
import numpy as np
import jax
import jax.numpy as jnp
from jax.experimental import pallas as pl
from jax.experimental.pallas import tpu as pltpu

# ---------------------------- static config --------------------------------
B, C1, H_IMG, W_IMG = 2, 4, 16, 16
O1, O2 = 4, 4                  # g = (4, 4)
C2 = O1 * O2                   # 16 output channels
STRIDE = 1                     # see TODO above
HW = H_IMG * W_IMG             # 256 lanes per image
LANES = B * HW                 # 512 lanes total


def channel_shuffle_src():
    """nn.ChannelShuffle(O1): out[k] = in[src[k]]."""
    return np.arange(C2).reshape(O1, C2 // O1).T.reshape(C2)


# --------------------------- parameter builders ------------------------------
def _bf16_snap(a):
    """Snap f32 values onto the bf16 grid (still stored as f32)."""
    return np.asarray(jnp.asarray(a, dtype=jnp.bfloat16).astype(jnp.float32))


def build_params():
    """Raw (PyTorch-layout) parameters of Stem, BN as inference-mode affine."""
    rng = np.random.RandomState(0)
    raw = {}
    # Conv2d(C1 -> O1, (3,1)) weight, (kw=1 axis squeezed) -> (O1, C1, 3).
    # bf16-grid so the in-kernel bf16 MXU matmul is exact.
    raw["W1"] = _bf16_snap(rng.uniform(-0.5, 0.5, (O1, C1, 3)).astype(np.float32))
    # BN1 (inference) per-channel affine; power-of-two scales keep folded
    # weights exactly bf16-representable.
    raw["s1"] = (2.0 ** rng.randint(-1, 2, O1)).astype(np.float32)
    raw["b1"] = rng.uniform(-0.2, 0.2, O1).astype(np.float32)
    # Grouped Conv2d(O1 -> C2, (1,3), groups=O1): 1 input channel per group,
    # weight squeezed to (C2, 3).
    raw["W2"] = rng.uniform(-0.5, 0.5, (C2, 3)).astype(np.float32)
    # BN2 (inference) per-channel affine.
    raw["s2"] = rng.uniform(0.5, 1.5, C2).astype(np.float32)
    raw["b2"] = rng.uniform(-0.2, 0.2, C2).astype(np.float32)
    return raw


def fold_params(raw):
    """Fold BN, grouped-conv expansion and ChannelShuffle into three slabs:
       w1k  (C2, 3*C1) bf16 : conv1 weights, BN1 folded, shuffled channel
                              order, vertical taps concatenated along K
                              (cols [0:4)=x[h-1], [4:8)=x[h], [8:12)=x[h+1])
       cslab (C2, 8)   f32  : [b1e | w_left | w_center | w_right | b2e | pad]
       mslab (4, LANES) f32 : [m_mW, m_pW, m_m1, m_p1] boundary-validity masks
    """
    W1, s1, b1 = raw["W1"], raw["s1"], raw["b1"]
    W2, s2, b2 = raw["W2"], raw["s2"], raw["b2"]

    src = channel_shuffle_src()            # final channel k <- pre-shuffle src[k]
    grp = src // O2                        # conv1 output channel feeding it

    W1f = s1[:, None, None] * W1                                   # (O1, C1, 3)
    w1k = np.concatenate([W1f[grp, :, kh] for kh in range(3)], axis=1)  # (C2, 3*C1)

    W2e = (s2[:, None] * W2)[src]                                  # (C2, 3)
    b2e = b2[src]
    b1e = b1[grp]

    # per-image boundary-validity masks over the flattened (b, h, w) lane axis
    i = np.arange(LANES)
    m_mW = ((i % HW) >= W_IMG).astype(np.float32)                  # x[h-1] valid
    m_pW = ((i % HW) < HW - W_IMG).astype(np.float32)              # x[h+1] valid
    m_m1 = ((i % W_IMG) != 0).astype(np.float32)                   # h[w-1] valid
    m_p1 = ((i % W_IMG) != W_IMG - 1).astype(np.float32)           # h[w+1] valid
    mslab = np.stack([m_mW, m_pW, m_m1, m_p1], axis=0)             # (4, LANES)

    cslab = np.zeros((C2, 8), np.float32)
    cslab[:, 0] = b1e
    cslab[:, 1] = W2e[:, 0]
    cslab[:, 2] = W2e[:, 1]
    cslab[:, 3] = W2e[:, 2]
    cslab[:, 4] = b2e

    return (jnp.asarray(w1k, jnp.bfloat16),      # exact: bf16-grid * 2^n scales
            jnp.asarray(cslab, jnp.float32),
            jnp.asarray(mslab, jnp.float32))


# --------------------------------- kernel ------------------------------------
def _stem_kernel(x_ref, w1_ref, c_ref, m_ref, o_ref):
    Bn = x_ref.shape[0]
    hw = x_ref.shape[-1]
    lanes = Bn * hw

    # lane-concatenate the batch: (B, C1, HW) -> (C1, B*HW); two vreg copies
    x = jnp.concatenate([x_ref[b] for b in range(Bn)], axis=1)     # (C1, lanes) f32

    m = m_ref[...]                                  # (4, lanes) boundary masks
    c = c_ref[...]                                  # (C2, 8) per-channel scalars
    b1e = c[:, 0:1]
    wl, wc, wr = c[:, 1:2], c[:, 2:3], c[:, 3:4]
    b2e = c[:, 4:5]

    # conv1 (3,1) + BN1: roll+mask the INPUT (XLU rolls on 4-row operands,
    # f32 VPU mask multiplies), then ONE (C2, 3*C1)@(3*C1, lanes) bf16 MXU
    # matmul evaluates all three vertical taps for all 16 shuffled channels.
    x_up = pltpu.roll(x, W_IMG, axis=1) * m[0:1, :]                # x[h-1], masked
    x_dn = pltpu.roll(x, lanes - W_IMG, axis=1) * m[1:2, :]        # x[h+1], masked
    xk = jnp.concatenate([x_up, x, x_dn], axis=0).astype(jnp.bfloat16)  # (3*C1, lanes)
    h = jnp.dot(w1_ref[...], xk, preferred_element_type=jnp.float32) + b1e  # (C2, lanes)

    # depthwise (1,3) conv + BN2 (ChannelShuffle already folded into channel
    # order); boundary masks + per-channel coefficients as VPU broadcasts.
    h_l = pltpu.roll(h, 1, axis=1) * m[2:3, :]                     # h[w-1], masked
    h_r = pltpu.roll(h, lanes - 1, axis=1) * m[3:4, :]             # h[w+1], masked
    y = wl * h_l + wc * h + wr * h_r + b2e

    # ReLU6, then store per image (lane-dense 256-lane slices)
    y = jnp.clip(y, 0.0, 6.0)
    for b in range(Bn):
        o_ref[b] = y[:, b * hw:(b + 1) * hw]


def stem_pallas(x, folded):
    w1k, cslab, mslab = folded
    Bn, Cin, Hh, Ww = x.shape
    hw = Hh * Ww
    xf = x.reshape(Bn, Cin, hw)        # free reshape, no transpose / extra copy

    flops = 2 * C2 * (3 * Cin) * Bn * hw + 24 * C2 * Bn * hw
    bytes_accessed = (xf.size * 4 + w1k.size * 2 + cslab.size * 4
                      + mslab.size * 4 + Bn * C2 * hw * 4)

    out = pl.pallas_call(
        _stem_kernel,
        out_shape=jax.ShapeDtypeStruct((Bn, C2, hw), jnp.float32),
        grid=(1,),
        in_specs=[
            pl.BlockSpec((Bn, Cin, hw), lambda i: (0, 0, 0)),
            pl.BlockSpec(w1k.shape, lambda i: (0, 0)),
            pl.BlockSpec(cslab.shape, lambda i: (0, 0)),
            pl.BlockSpec(mslab.shape, lambda i: (0, 0)),
        ],
        out_specs=pl.BlockSpec((Bn, C2, hw), lambda i: (0, 0, 0)),
        compiler_params=pltpu.CompilerParams(
            dimension_semantics=("arbitrary",)),
        cost_estimate=pl.CostEstimate(flops=flops, transcendentals=0,
                                      bytes_accessed=bytes_accessed),
    )(xf, w1k, cslab, mslab)

    return out.reshape(Bn, C2, Hh, Ww)   # free reshape


# ------------------------ plain-JAX reference (NCHW) -------------------------
def stem_ref(x, raw):
    W1, s1, b1 = raw["W1"], raw["s1"], raw["b1"]
    W2, s2, b2 = raw["W2"], raw["s2"], raw["b2"]
    Bn, Cin, Hh, Ww = x.shape

    # Conv2d(c1 -> o1, (3,1), stride 1, pad (1,0), bias=False)
    xp = jnp.pad(x, ((0, 0), (0, 0), (1, 1), (0, 0)))
    y = jnp.zeros((Bn, O1, Hh, Ww), jnp.float32)
    for kh in range(3):
        y = y + jnp.einsum('oc,bchw->bohw', jnp.asarray(W1[:, :, kh]),
                           xp[:, :, kh:kh + Hh, :],
                           precision=jax.lax.Precision.HIGHEST)
    y = y * s1.reshape(1, -1, 1, 1) + b1.reshape(1, -1, 1, 1)       # BN1 (inference)

    # Conv2d(o1 -> o1*o2, (1,3), stride 1, pad (0,1), groups=o1, bias=False)
    yg = y[:, np.arange(C2) // O2]                                   # group expansion
    yp = jnp.pad(yg, ((0, 0), (0, 0), (0, 0), (1, 1)))
    z = jnp.zeros((Bn, C2, Hh, Ww), jnp.float32)
    for kw in range(3):
        z = z + jnp.asarray(W2[:, kw]).reshape(1, -1, 1, 1) * yp[:, :, :, kw:kw + Ww]
    z = z * s2.reshape(1, -1, 1, 1) + b2.reshape(1, -1, 1, 1)       # BN2 (inference)

    # ChannelShuffle(o1)
    z = z[:, channel_shuffle_src()]
    # ReLU6
    return jnp.clip(z, 0.0, 6.0)


# ---------------------------------- main --------------------------------------
if __name__ == "__main__":
    raw = build_params()
    folded = fold_params(raw)

    key = jax.random.PRNGKey(0)
    x = jax.random.normal(key, (B, C1, H_IMG, W_IMG), dtype=jnp.float32)
    # snap the test input onto the bf16 grid so the single-pass bf16 MXU matmul
    # is exact and a tight tolerance is valid on every TPU generation
    x = x.astype(jnp.bfloat16).astype(jnp.float32)

    out = jax.block_until_ready(stem_pallas(x, folded))

    ref = stem_ref(x, raw)
    np.testing.assert_allclose(np.asarray(out), np.asarray(ref),
                               rtol=1e-5, atol=1e-5)
    print("KERNEL_OK")
</pallas_src>

<mosaic_0001>
module attributes {stable_mosaic.version = 11 : i64} {
  func.func @_stem_kernel(%arg0: i32, %arg1: memref<2x4x256xf32, #tpu.memory_space<vmem>>, %arg2: memref<16x12xbf16, #tpu.memory_space<vmem>>, %arg3: memref<16x8xf32, #tpu.memory_space<vmem>>, %arg4: memref<4x512xf32, #tpu.memory_space<vmem>>, %arg5: memref<2x16x256xf32, #tpu.memory_space<vmem>>) attributes {dimension_semantics = [#tpu.dimension_semantics<arbitrary>], iteration_bounds = array<i64: 1>, scalar_prefetch = 0 : i64, scratch_operands = 0 : i64, tpu.core_type = #tpu.core_type<tc>, window_params = [{pipeline_mode = #tpu.pipeline_mode<synchronous>, transform_indices = @transform_0, window_bounds = array<i64: 2, 4, 256>}, {pipeline_mode = #tpu.pipeline_mode<synchronous>, transform_indices = @transform_1, window_bounds = array<i64: 16, 12>}, {pipeline_mode = #tpu.pipeline_mode<synchronous>, transform_indices = @transform_2, window_bounds = array<i64: 16, 8>}, {pipeline_mode = #tpu.pipeline_mode<synchronous>, transform_indices = @transform_3, window_bounds = array<i64: 4, 512>}, {pipeline_mode = #tpu.pipeline_mode<synchronous>, transform_indices = @transform_4, window_bounds = array<i64: 2, 16, 256>}]} {
    %c0 = arith.constant 0 : index
    %c0_0 = arith.constant 0 : index
    %c0_1 = arith.constant 0 : index
    %0 = vector.load %arg1[%c0, %c0_0, %c0_1] : memref<2x4x256xf32, #tpu.memory_space<vmem>>, vector<1x4x256xf32>
    %1 = vector.shape_cast %0 : vector<1x4x256xf32> to vector<4x256xf32>
    %c1 = arith.constant 1 : index
    %c0_2 = arith.constant 0 : index
    %c0_3 = arith.constant 0 : index
    %2 = vector.load %arg1[%c1, %c0_2, %c0_3] : memref<2x4x256xf32, #tpu.memory_space<vmem>>, vector<1x4x256xf32>
    %3 = vector.shape_cast %2 : vector<1x4x256xf32> to vector<4x256xf32>
    %4 = tpu.concatenate %1, %3 in 1 : vector<4x256xf32>, vector<4x256xf32> -> vector<4x512xf32>
    %c0_4 = arith.constant 0 : index
    %c0_5 = arith.constant 0 : index
    %5 = vector.load %arg4[%c0_4, %c0_5] : memref<4x512xf32, #tpu.memory_space<vmem>>, vector<4x512xf32>
    %c0_6 = arith.constant 0 : index
    %c0_7 = arith.constant 0 : index
    %6 = vector.load %arg3[%c0_6, %c0_7] : memref<16x8xf32, #tpu.memory_space<vmem>>, vector<16x8xf32>
    %7 = vector.extract_strided_slice %6 {offsets = [0, 0], sizes = [16, 1], strides = [1, 1]} : vector<16x8xf32> to vector<16x1xf32>
    %8 = vector.extract_strided_slice %6 {offsets = [0, 1], sizes = [16, 1], strides = [1, 1]} : vector<16x8xf32> to vector<16x1xf32>
    %9 = vector.extract_strided_slice %6 {offsets = [0, 2], sizes = [16, 1], strides = [1, 1]} : vector<16x8xf32> to vector<16x1xf32>
    %10 = vector.extract_strided_slice %6 {offsets = [0, 3], sizes = [16, 1], strides = [1, 1]} : vector<16x8xf32> to vector<16x1xf32>
    %11 = vector.extract_strided_slice %6 {offsets = [0, 4], sizes = [16, 1], strides = [1, 1]} : vector<16x8xf32> to vector<16x1xf32>
    %c16_i32 = arith.constant 16 : i32
    %12 = tpu.dynamic_rotate %4 by %c16_i32 dim 1 : vector<4x512xf32>, i32 -> vector<4x512xf32>
    %13 = vector.extract_strided_slice %5 {offsets = [0, 0], sizes = [1, 512], strides = [1, 1]} : vector<4x512xf32> to vector<1x512xf32>
    %14 = vector.broadcast %13 : vector<1x512xf32> to vector<4x512xf32>
    %15 = arith.mulf %12, %14 : vector<4x512xf32>
    %c496_i32 = arith.constant 496 : i32
    %16 = tpu.dynamic_rotate %4 by %c496_i32 dim 1 : vector<4x512xf32>, i32 -> vector<4x512xf32>
    %17 = vector.extract_strided_slice %5 {offsets = [1, 0], sizes = [1, 512], strides = [1, 1]} : vector<4x512xf32> to vector<1x512xf32>
    %18 = vector.broadcast %17 : vector<1x512xf32> to vector<4x512xf32>
    %19 = arith.mulf %16, %18 : vector<4x512xf32>
    %20 = tpu.concatenate %15, %4, %19 in 0 : vector<4x512xf32>, vector<4x512xf32>, vector<4x512xf32> -> vector<12x512xf32>
    %21 = arith.truncf %20 : vector<12x512xf32> to vector<12x512xbf16>
    %c0_8 = arith.constant 0 : index
    %c0_9 = arith.constant 0 : index
    %22 = vector.load %arg2[%c0_8, %c0_9] : memref<16x12xbf16, #tpu.memory_space<vmem>>, vector<16x12xbf16>
    %cst = arith.constant dense<0.000000e+00> : vector<16x512xf32>
    %23 = tpu.matmul %22, %21, %cst {dimension_numbers = #tpu.dot_dimension_numbers<[1], [0], [0], [1], [0, 0, 1, 1], [], []>} : vector<16x12xbf16>, vector<12x512xbf16>, vector<16x512xf32> -> vector<16x512xf32>
    %24 = vector.broadcast %7 : vector<16x1xf32> to vector<16x512xf32>
    %25 = arith.addf %23, %24 : vector<16x512xf32>
    %c1_i32 = arith.constant 1 : i32
    %26 = tpu.dynamic_rotate %25 by %c1_i32 dim 1 : vector<16x512xf32>, i32 -> vector<16x512xf32>
    %27 = vector.extract_strided_slice %5 {offsets = [2, 0], sizes = [1, 512], strides = [1, 1]} : vector<4x512xf32> to vector<1x512xf32>
    %28 = vector.broadcast %27 : vector<1x512xf32> to vector<16x512xf32>
    %29 = arith.mulf %26, %28 : vector<16x512xf32>
    %c511_i32 = arith.constant 511 : i32
    %30 = tpu.dynamic_rotate %25 by %c511_i32 dim 1 : vector<16x512xf32>, i32 -> vector<16x512xf32>
    %31 = vector.extract_strided_slice %5 {offsets = [3, 0], sizes = [1, 512], strides = [1, 1]} : vector<4x512xf32> to vector<1x512xf32>
    %32 = vector.broadcast %31 : vector<1x512xf32> to vector<16x512xf32>
    %33 = arith.mulf %30, %32 : vector<16x512xf32>
    %34 = vector.broadcast %8 : vector<16x1xf32> to vector<16x512xf32>
    %35 = arith.mulf %34, %29 : vector<16x512xf32>
    %36 = vector.broadcast %9 : vector<16x1xf32> to vector<16x512xf32>
    %37 = arith.mulf %36, %25 : vector<16x512xf32>
    %38 = arith.addf %35, %37 : vector<16x512xf32>
    %39 = vector.broadcast %10 : vector<16x1xf32> to vector<16x512xf32>
    %40 = arith.mulf %39, %33 : vector<16x512xf32>
    %41 = arith.addf %38, %40 : vector<16x512xf32>
    %42 = vector.broadcast %11 : vector<16x1xf32> to vector<16x512xf32>
    %43 = arith.addf %41, %42 : vector<16x512xf32>
    %cst_10 = arith.constant 0.000000e+00 : f32
    %cst_11 = arith.constant 6.000000e+00 : f32
    %44 = vector.broadcast %cst_10 : f32 to vector<16x512xf32>
    %45 = arith.maximumf %44, %43 : vector<16x512xf32>
    %46 = vector.broadcast %cst_11 : f32 to vector<16x512xf32>
    %47 = arith.minimumf %46, %45 : vector<16x512xf32>
    %48 = vector.extract_strided_slice %47 {offsets = [0, 0], sizes = [16, 256], strides = [1, 1]} : vector<16x512xf32> to vector<16x256xf32>
    %c0_12 = arith.constant 0 : index
    %c0_13 = arith.constant 0 : index
    %c0_14 = arith.constant 0 : index
    %49 = vector.load %arg5[%c0_12, %c0_13, %c0_14] : memref<2x16x256xf32, #tpu.memory_space<vmem>>, vector<1x16x256xf32>
    %50 = vector.shape_cast %49 : vector<1x16x256xf32> to vector<16x256xf32>
    %51 = vector.shape_cast %48 : vector<16x256xf32> to vector<1x16x256xf32>
    tpu.vector_store %arg5[%c0_12, %c0_13, %c0_14], %51 {strides = array<i32>} : memref<2x16x256xf32, #tpu.memory_space<vmem>>, vector<1x16x256xf32>,
    %52 = vector.extract_strided_slice %47 {offsets = [0, 256], sizes = [16, 256], strides = [1, 1]} : vector<16x512xf32> to vector<16x256xf32>
    %c1_15 = arith.constant 1 : index
    %c0_16 = arith.constant 0 : index
    %c0_17 = arith.constant 0 : index
    %53 = vector.load %arg5[%c1_15, %c0_16, %c0_17] : memref<2x16x256xf32, #tpu.memory_space<vmem>>, vector<1x16x256xf32>
    %54 = vector.shape_cast %53 : vector<1x16x256xf32> to vector<16x256xf32>
    %55 = vector.shape_cast %52 : vector<16x256xf32> to vector<1x16x256xf32>
    tpu.vector_store %arg5[%c1_15, %c0_16, %c0_17], %55 {strides = array<i32>} : memref<2x16x256xf32, #tpu.memory_space<vmem>>, vector<1x16x256xf32>,
    return
  }
  func.func @transform_0(%arg0: i32) -> (i32, i32, i32) {
    %c0_i32 = arith.constant 0 : i32
    %c0_i32_0 = arith.constant 0 : i32
    %c0_i32_1 = arith.constant 0 : i32
    %c0_i32_2 = arith.constant 0 : i32
    return %c0_i32, %c0_i32_0, %c0_i32_1 : i32, i32, i32
  }
  func.func @transform_1(%arg0: i32) -> (i32, i32) {
    %c0_i32 = arith.constant 0 : i32
    %c0_i32_0 = arith.constant 0 : i32
    %c0_i32_1 = arith.constant 0 : i32
    return %c0_i32, %c0_i32_0 : i32, i32
  }
  func.func @transform_2(%arg0: i32) -> (i32, i32) {
    %c0_i32 = arith.constant 0 : i32
    %c0_i32_0 = arith.constant 0 : i32
    %c0_i32_1 = arith.constant 0 : i32
    return %c0_i32, %c0_i32_0 : i32, i32
  }
  func.func @transform_3(%arg0: i32) -> (i32, i32) {
    %c0_i32 = arith.constant 0 : i32
    %c0_i32_0 = arith.constant 0 : i32
    %c0_i32_1 = arith.constant 0 : i32
    return %c0_i32, %c0_i32_0 : i32, i32
  }
  func.func @transform_4(%arg0: i32) -> (i32, i32, i32) {
    %c0_i32 = arith.constant 0 : i32
    %c0_i32_0 = arith.constant 0 : i32
    %c0_i32_1 = arith.constant 0 : i32
    %c0_i32_2 = arith.constant 0 : i32
    return %c0_i32, %c0_i32_0, %c0_i32_1 : i32, i32, i32
  }
}

</mosaic_0001>

<llo_original>
// kernel: tpu_custom_call.1
$region0: #{tpu_custom_call.1}
  #allocation0 [shape = 'u32[]', space=smem, size = 0x4, offset = 0x4, fixed_abs, tag = 'smem constant byte address 0x4 - core index']
  #allocation1 [shape = 'u32[144,128]{1,0:T(1,128)}', space=vmem, size = 0x12000, scoped, tag = 'internal scratch']
  %s0 = inlined_call_operand.vmem [shape: f32[2,4,256], index: 0, kind: input, shape index: {}]
  %s1 = inlined_call_operand.hbm [shape: bf16[16,12], index: 1, kind: input, shape index: {}]
  %s2 = inlined_call_operand.vmem [shape: f32[16,8], index: 2, kind: input, shape index: {}]
  %s3 = inlined_call_operand.vmem [shape: f32[4,512], index: 3, kind: input, shape index: {}]
  %s4 = inlined_call_operand.hbm [shape: f32[2,16,256], index: 4, kind: output, shape index: {}]
  %s5 = sld [smem:[#allocation0]]
  $region30: #{tpu_custom_call.1} parent=0
    _
  %s7 = ssub.s32 1, %s5
  %s8 = scalar_select 0, %s7, %s5
  $region1: #{tpu_custom_call.1} parent=0
    #allocation2 [shape = 'u8[4096]{0}', space=vmem, size = 0x1000, scoped, tag = 'input window, operand 1, single buffered']
    #allocation3 [shape = 's32[1]{0}', space=sflag, size = 0x4, scoped, tag = 'scoped memory for tpu_custom_call.1']
    #allocation4 [shape = 's32[1]{0}', space=sflag, size = 0x4, scoped, tag = 'scoped memory for tpu_custom_call.1']
    #allocation5 [shape = 'u8[32768]{0}', space=vmem, size = 0x8000, scoped, tag = 'output window, operand 0, single buffered']
    %9 = vsyncpa [#allocation3], 0
    %10 = vsyncpa [#allocation4], 0
    // Predicated region
    $region2: #{tpu_custom_call.1} parent=1 // pred_check
      _
    $region3: #{tpu_custom_call.1} parent=1 // pred_check_branch
      %12 = sbr.rel (0) target = $region5
    $region4: #{tpu_custom_call.1} parent=1 // pred_region
      _
    $region5: #{tpu_custom_call.1} parent=1 // pred_fallthru
      _
    // Predicated region
    $region6: #{tpu_custom_call.1} parent=1 // pred_check
      _
    $region7: #{tpu_custom_call.1} parent=1 // pred_check_branch
      %14 = sbr.rel (0) target = $region9
    $region8: #{tpu_custom_call.1} parent=1 // pred_region
      %s16 = ssub.s32 128, 128
      %17 = vsyncadd [#allocation3], %s16
      %s18 = sshll.u32 [#allocation2], 4
      %s19 = int_to_ptr.vmem [resolvable:$true] %s18
      %24 = dma.hbm_to_vmem [thread:$0]  %s1, 128, %s19, [#allocation3], 64, 64, 4
    $region9: #{tpu_custom_call.1} parent=1 // pred_fallthru
      _
    // Predicated region
    $region10: #{tpu_custom_call.1} parent=1 // pred_check
      _
    $region11: #{tpu_custom_call.1} parent=1 // pred_check_branch
      %26 = sbr.rel (0) target = $region13
    $region12: #{tpu_custom_call.1} parent=1 // pred_region
      _
    $region13: #{tpu_custom_call.1} parent=1 // pred_fallthru
      _
    // Predicated region
    $region14: #{tpu_custom_call.1} parent=1 // pred_check
      _
    $region15: #{tpu_custom_call.1} parent=1 // pred_check_branch
      %28 = sbr.rel (0) target = $region17
    $region16: #{tpu_custom_call.1} parent=1 // pred_region
      _
    $region17: #{tpu_custom_call.1} parent=1 // pred_fallthru
      _
    // Predicated region
    $region18: #{tpu_custom_call.1} parent=1 // pred_check
      _
    $region19: #{tpu_custom_call.1} parent=1 // pred_check_branch
      %30 = sbr.rel (0) target = $region21
    $region20: #{tpu_custom_call.1} parent=1 // pred_region
      %31 = dma.done [#allocation3], 128
    $region21: #{tpu_custom_call.1} parent=1 // pred_fallthru
      _
    %v33 = vld [vmem:[%s0] sm:$0xff]
    %s34 = scalar_lea.vmem %s0, 8
    %v35 = vld [vmem:[%s34] sm:$0xff]
    %v37 = vcombine.high %v33, %v33
    %v40 = vcombine.high %v35, %v35
    %v42 = vld [vmem:[%s3] sm:$0xff]
    %v43 = vld [vmem:[%s3 + $0x8] sm:$0xff]
    %v44 = vld [vmem:[%s2] sm:$0xff]
    %v45 = vld [vmem:[%s2 + $0x8] sm:$0xff]
    %46 = vrot.lane.b32.xlu0 %v33, 16
    %v47 = vpop.permute.xlu0 %46
    %48 = vrot.lane.b32.xlu0 %v37, 16
    %v49 = vpop.permute.xlu0 %48
    %50 = vrot.lane.b32.xlu0 %v35, 16
    %v51 = vpop.permute.xlu0 %50
    %52 = vrot.lane.b32.xlu0 %v40, 16
    %v53 = vpop.permute.xlu0 %52
    %v54 = vlaneseq
    %v55 = vand.u32 %v54, 127
    %vm56 = vcmp.lt.s32.totalorder %v55, 16
    %v57 = vsel %vm56, %v51, %v53
    %v58 = vsel %vm56, %v49, %v51
    %v59 = vsel %vm56, %v47, %v49
    %v60 = vsel %vm56, %v53, %v47
    %v63 = vlaneseq
    %v64 = vshrl.u32 %v63, 7
    %v65 = vsub.s32 0, %v64
    %v66 = vrot.slane %v42, %v65
    %v67 = vlaneseq
    %v68 = vshrl.u32 %v67, 7
    %v69 = vsub.s32 4, %v68
    %v70 = vrot.slane %v42, %v69
    %v71 = vlaneseq
    %v72 = vshrl.u32 %v71, 7
    %v73 = vsub.s32 0, %v72
    %v74 = vrot.slane %v43, %v73
    %v75 = vlaneseq
    %v76 = vshrl.u32 %v75, 7
    %v77 = vsub.s32 4, %v76
    %v78 = vrot.slane %v43, %v77
    %v83 = vlaneseq
    %v84 = vshrl.u32 %v83, 7
    %v85 = vsub.s32 0, %v84
    %v86 = vrot.slane %v66, %v85
    %v87 = vlaneseq
    %v88 = vshrl.u32 %v87, 7
    %v89 = vsub.s32 0, %v88
    %v90 = vrot.slane %v70, %v89
    %v91 = vlaneseq
    %v92 = vshrl.u32 %v91, 7
    %v93 = vsub.s32 0, %v92
    %v94 = vrot.slane %v74, %v93
    %v95 = vlaneseq
    %v96 = vshrl.u32 %v95, 7
    %v97 = vsub.s32 0, %v96
    %v98 = vrot.slane %v78, %v97
    %v99 = vmul.f32 %v60, %v86
    %v100 = vmul.f32 %v59, %v90
    %v101 = vmul.f32 %v58, %v94
    %v102 = vmul.f32 %v57, %v98
    %103 = vrot.lane.b32.xlu0 %v33, 112
    %v104 = vpop.permute.xlu0 %103
    %105 = vrot.lane.b32.xlu0 %v37, 112
    %v106 = vpop.permute.xlu0 %105
    %107 = vrot.lane.b32.xlu0 %v35, 112
    %v108 = vpop.permute.xlu0 %107
    %109 = vrot.lane.b32.xlu0 %v40, 112
    %v110 = vpop.permute.xlu0 %109
    %vm111 = vcmp.lt.s32.totalorder %v55, 112
    %v112 = vsel %vm111, %v108, %v110
    %v113 = vsel %vm111, %v106, %v108
    %v114 = vsel %vm111, %v104, %v106
    %v115 = vsel %vm111, %v110, %v104
    %v116 = vlaneseq
    %v117 = vshrl.u32 %v116, 7
    %v118 = vsub.s32 1, %v117
    %v119 = vrot.slane %v42, %v118
    %v120 = vlaneseq
    %v121 = vshrl.u32 %v120, 7
    %v122 = vsub.s32 5, %v121
    %v123 = vrot.slane %v42, %v122
    %v124 = vlaneseq
    %v125 = vshrl.u32 %v124, 7
    %v126 = vsub.s32 1, %v125
    %v127 = vrot.slane %v43, %v126
    %v128 = vlaneseq
    %v129 = vshrl.u32 %v128, 7
    %v130 = vsub.s32 5, %v129
    %v131 = vrot.slane %v43, %v130
    %v136 = vlaneseq
    %v137 = vshrl.u32 %v136, 7
    %v138 = vsub.s32 1, %v137
    %v139 = vrot.slane %v119, %v138
    %v140 = vlaneseq
    %v141 = vshrl.u32 %v140, 7
    %v142 = vsub.s32 1, %v141
    %v143 = vrot.slane %v123, %v142
    %v144 = vlaneseq
    %v145 = vshrl.u32 %v144, 7
    %v146 = vsub.s32 1, %v145
    %v147 = vrot.slane %v127, %v146
    %v148 = vlaneseq
    %v149 = vshrl.u32 %v148, 7
    %v150 = vsub.s32 1, %v149
    %v151 = vrot.slane %v131, %v150
    %v152 = vmul.f32 %v114, %v139
    %v153 = vmul.f32 %v113, %v143
    %v154 = vmul.f32 %v112, %v147
    %v155 = vmul.f32 %v115, %v151
    %v156 = vrot.slane %v33, 4
    %v157 = vrot.slane %v37, 4
    %v158 = vrot.slane %v35, 4
    %v159 = vrot.slane %v40, 4
    %vm164 = vcmask 1043456
    %v165 = vsel %vm164, %v99, %v156
    %v166 = vsel %vm164, %v100, %v157
    %v167 = vsel %vm164, %v101, %v158
    %v168 = vsel %vm164, %v102, %v159
    %v169 = vpack.c.bf16 %v152, %v165
    %v170 = vpack.c.bf16 %v153, %v166
    %v171 = vpack.c.bf16 %v154, %v167
    %v172 = vpack.c.bf16 %v155, %v168
    %v173 = vld [vmem:[#allocation2] sm:$0xf]
    %v174 = vld [vmem:[#allocation2 + $0x4] sm:$0xf]
    %176 = vset.pattern.permute.xlu0 0
    %177 = vperm.xlu0 %176, %v44
    %v178 = vpop.permute.xlu0 %177
    %181 = vset.pattern.permute.xlu0 0
    %182 = vperm.xlu0 %181, %v45
    %v183 = vpop.permute.xlu0 %182
    %v187 = vunpack.c.l.b16 %v173
    %v188 = vunpack.c.l.b16 %v174
    %v189 = vpack.c.b16 %v188, %v187
    %vm190 = vcmask 97280
    %v192 = vsel %vm190, %v189, 0
    %vm194 = vcmask 1045504
    %v196 = vsel %vm194, %v169, 0
    %v199 = vsel %vm194, %v170, 0
    %v202 = vsel %vm194, %v171, 0
    %v205 = vsel %vm194, %v172, 0
    %207 = vmatprep.subr.bf16.mxu0 %v199
    %208 = vmatpush1.bf16.msra.mxu0 %v196
    %209 = vmatprep.subr.bf16.mxu0 0
    %210 = vmatpush1.bf16.msra.mxu0 0
    %211 = vmatprep.subr.bf16.mxu0 0
    %212 = vmatpush1.bf16.msra.mxu0 0
    %213 = vmatprep.subr.bf16.mxu0 0
    %214 = vmatpush1.bf16.msra.mxu0 0
    %215 = vmatprep.subr.bf16.mxu0 0
    %216 = vmatpush1.bf16.msra.mxu0 0
    %217 = vmatprep.subr.bf16.mxu0 0
    %218 = vmatpush1.bf16.msra.mxu0 0
    %219 = vmatprep.subr.bf16.mxu0 0
    %220 = vmatpush1.bf16.msra.mxu0 0
    %221 = vmatprep.subr.bf16.mxu0 0
    %222 = vmatpush1.bf16.msra.mxu0 0
    %223 = vmatprep.subr.bf16.mxu0 0
    %224 = vmatpush1.bf16.msra.mxu0 0
    %225 = vmatprep.subr.bf16.mxu0 0
    %226 = vmatpush1.bf16.msra.mxu0 0
    %227 = vmatprep.subr.bf16.mxu0 0
    %228 = vmatpush1.bf16.msra.mxu0 0
    %229 = vmatprep.subr.bf16.mxu0 0
    %230 = vmatpush1.bf16.msra.mxu0 0
    %231 = vmatprep.subr.bf16.mxu0 0
    %232 = vmatpush1.bf16.msra.mxu0 0
    %233 = vmatprep.subr.bf16.mxu0 0
    %234 = vmatpush1.bf16.msra.mxu0 0
    %235 = vmatprep.subr.bf16.mxu0 0
    %236 = vmatpush1.bf16.msra.mxu0 0
    %237 = vmatprep.subr.bf16.mxu0 0
    %238 = vmatpush1.bf16.msra.mxu0 0
    %239 = vmatprep.mubr.bf16.mxu0 0
    %240 = vmatmul.mubr.bf16.gmra.mrb[0].mxu0 %v192
    %v241 = vpop.f32.mrb[0].mxu0
    %v242 = vadd.f32 %v178, %v241
    %v243 = vpop.f32.mrb[0].mxu0
    %v244 = vadd.f32 %v178, %v243
    %v245 = vpop.f32.mrb[0].mxu0
    %v246 = vadd.f32 %v183, %v245
    %v247 = vpop.f32.mrb[0].mxu0
    %v248 = vadd.f32 %v183, %v247
    %249 = vdwg.mxu0
    %250 = vmatprep.subr.bf16.mxu0 %v205
    %251 = vmatpush1.bf16.msra.mxu0 %v202
    %252 = vmatprep.subr.bf16.mxu0 0
    %253 = vmatpush1.bf16.msra.mxu0 0
    %254 = vmatprep.subr.bf16.mxu0 0
    %255 = vmatpush1.bf16.msra.mxu0 0
    %256 = vmatprep.subr.bf16.mxu0 0
    %257 = vmatpush1.bf16.msra.mxu0 0
    %258 = vmatprep.subr.bf16.mxu0 0
    %259 = vmatpush1.bf16.msra.mxu0 0
    %260 = vmatprep.subr.bf16.mxu0 0
    %261 = vmatpush1.bf16.msra.mxu0 0
    %262 = vmatprep.subr.bf16.mxu0 0
    %263 = vmatpush1.bf16.msra.mxu0 0
    %264 = vmatprep.subr.bf16.mxu0 0
    %265 = vmatpush1.bf16.msra.mxu0 0
    %266 = vmatprep.subr.bf16.mxu0 0
    %267 = vmatpush1.bf16.msra.mxu0 0
    %268 = vmatprep.subr.bf16.mxu0 0
    %269 = vmatpush1.bf16.msra.mxu0 0
    %270 = vmatprep.subr.bf16.mxu0 0
    %271 = vmatpush1.bf16.msra.mxu0 0
    %272 = vmatprep.subr.bf16.mxu0 0
    %273 = vmatpush1.bf16.msra.mxu0 0
    %274 = vmatprep.subr.bf16.mxu0 0
    %275 = vmatpush1.bf16.msra.mxu0 0
    %276 = vmatprep.subr.bf16.mxu0 0
    %277 = vmatpush1.bf16.msra.mxu0 0
    %278 = vmatprep.subr.bf16.mxu0 0
    %279 = vmatpush1.bf16.msra.mxu0 0
    %280 = vmatprep.subr.bf16.mxu0 0
    %281 = vmatpush1.bf16.msra.mxu0 0
    %282 = vmatprep.mubr.bf16.mxu0 0
    %283 = vmatmul.mubr.bf16.gmra.mrb[0].mxu0 %v192
    %v284 = vpop.f32.mrb[0].mxu0
    %v285 = vadd.f32 %v178, %v284
    %v286 = vpop.f32.mrb[0].mxu0
    %v287 = vadd.f32 %v178, %v286
    %v288 = vpop.f32.mrb[0].mxu0
    %v289 = vadd.f32 %v183, %v288
    %v290 = vpop.f32.mrb[0].mxu0
    %v291 = vadd.f32 %v183, %v290
    %292 = vdwg.mxu0
    %293 = vrot.lane.b32.xlu0 %v242, 1
    %v294 = vpop.permute.xlu0 %293
    %295 = vrot.lane.b32.xlu0 %v246, 1
    %v296 = vpop.permute.xlu0 %295
    %297 = vrot.lane.b32.xlu0 %v244, 1
    %v298 = vpop.permute.xlu0 %297
    %299 = vrot.lane.b32.xlu0 %v248, 1
    %v300 = vpop.permute.xlu0 %299
    %301 = vrot.lane.b32.xlu0 %v285, 1
    %v302 = vpop.permute.xlu0 %301
    %303 = vrot.lane.b32.xlu0 %v289, 1
    %v304 = vpop.permute.xlu0 %303
    %305 = vrot.lane.b32.xlu0 %v287, 1
    %v306 = vpop.permute.xlu0 %305
    %307 = vrot.lane.b32.xlu0 %v291, 1
    %v308 = vpop.permute.xlu0 %307
    %vm309 = vcmp.lt.s32.totalorder %v55, 1
    %v310 = vsel %vm309, %v302, %v306
    %v311 = vsel %vm309, %v304, %v308
    %v312 = vsel %vm309, %v298, %v302
    %v313 = vsel %vm309, %v300, %v304
    %v314 = vsel %vm309, %v294, %v298
    %v315 = vsel %vm309, %v296, %v300
    %v316 = vsel %vm309, %v306, %v294
    %v317 = vsel %vm309, %v308, %v296
    %v318 = vlaneseq
    %v319 = vshrl.u32 %v318, 7
    %v320 = vsub.s32 2, %v319
    %v321 = vrot.slane %v42, %v320
    %v322 = vlaneseq
    %v323 = vshrl.u32 %v322, 7
    %v324 = vsub.s32 6, %v323
    %v325 = vrot.slane %v42, %v324
    %v326 = vlaneseq
    %v327 = vshrl.u32 %v326, 7
    %v328 = vsub.s32 2, %v327
    %v329 = vrot.slane %v43, %v328
    %v330 = vlaneseq
    %v331 = vshrl.u32 %v330, 7
    %v332 = vsub.s32 6, %v331
    %v333 = vrot.slane %v43, %v332
    %v338 = vlaneseq
    %v339 = vshrl.u32 %v338, 7
    %v340 = vsub.s32 2, %v339
    %v341 = vrot.slane %v321, %v340
    %v342 = vlaneseq
    %v343 = vshrl.u32 %v342, 7
    %v344 = vsub.s32 2, %v343
    %v345 = vrot.slane %v325, %v344
    %v346 = vlaneseq
    %v347 = vshrl.u32 %v346, 7
    %v348 = vsub.s32 2, %v347
    %v349 = vrot.slane %v329, %v348
    %v350 = vlaneseq
    %v351 = vshrl.u32 %v350, 7
    %v352 = vsub.s32 2, %v351
    %v353 = vrot.slane %v333, %v352
    %v354 = vmul.f32 %v316, %v341
    %v355 = vmul.f32 %v314, %v345
    %v356 = vmul.f32 %v312, %v349
    %v357 = vmul.f32 %v310, %v353
    %v358 = vmul.f32 %v317, %v341
    %v359 = vmul.f32 %v315, %v345
    %v360 = vmul.f32 %v313, %v349
    %v361 = vmul.f32 %v311, %v353
    %362 = vrot.lane.b32.xlu0 %v242, 127
    %v363 = vpop.permute.xlu0 %362
    %364 = vrot.lane.b32.xlu0 %v246, 127
    %v365 = vpop.permute.xlu0 %364
    %366 = vrot.lane.b32.xlu0 %v244, 127
    %v367 = vpop.permute.xlu0 %366
    %368 = vrot.lane.b32.xlu0 %v248, 127
    %v369 = vpop.permute.xlu0 %368
    %370 = vrot.lane.b32.xlu0 %v285, 127
    %v371 = vpop.permute.xlu0 %370
    %372 = vrot.lane.b32.xlu0 %v289, 127
    %v373 = vpop.permute.xlu0 %372
    %374 = vrot.lane.b32.xlu0 %v287, 127
    %v375 = vpop.permute.xlu0 %374
    %376 = vrot.lane.b32.xlu0 %v291, 127
    %v377 = vpop.permute.xlu0 %376
    %vm378 = vcmp.lt.s32.totalorder %v55, 127
    %v379 = vsel %vm378, %v371, %v375
    %v380 = vsel %vm378, %v373, %v377
    %v381 = vsel %vm378, %v367, %v371
    %v382 = vsel %vm378, %v369, %v373
    %v383 = vsel %vm378, %v363, %v367
    %v384 = vsel %vm378, %v365, %v369
    %v385 = vsel %vm378, %v375, %v363
    %v386 = vsel %vm378, %v377, %v365
    %v387 = vlaneseq
    %v388 = vshrl.u32 %v387, 7
    %v389 = vsub.s32 3, %v388
    %v390 = vrot.slane %v42, %v389
    %v391 = vlaneseq
    %v392 = vshrl.u32 %v391, 7
    %v393 = vsub.s32 7, %v392
    %v394 = vrot.slane %v42, %v393
    %v395 = vlaneseq
    %v396 = vshrl.u32 %v395, 7
    %v397 = vsub.s32 3, %v396
    %v398 = vrot.slane %v43, %v397
    %v399 = vlaneseq
    %v400 = vshrl.u32 %v399, 7
    %v401 = vsub.s32 7, %v400
    %v402 = vrot.slane %v43, %v401
    %v407 = vlaneseq
    %v408 = vshrl.u32 %v407, 7
    %v409 = vsub.s32 3, %v408
    %v410 = vrot.slane %v390, %v409
    %v411 = vlaneseq
    %v412 = vshrl.u32 %v411, 7
    %v413 = vsub.s32 3, %v412
    %v414 = vrot.slane %v394, %v413
    %v415 = vlaneseq
    %v416 = vshrl.u32 %v415, 7
    %v417 = vsub.s32 3, %v416
    %v418 = vrot.slane %v398, %v417
    %v419 = vlaneseq
    %v420 = vshrl.u32 %v419, 7
    %v421 = vsub.s32 3, %v420
    %v422 = vrot.slane %v402, %v421
    %v423 = vmul.f32 %v383, %v410
    %v424 = vmul.f32 %v381, %v414
    %v425 = vmul.f32 %v379, %v418
    %v426 = vmul.f32 %v385, %v422
    %v427 = vmul.f32 %v384, %v410
    %v428 = vmul.f32 %v382, %v414
    %v429 = vmul.f32 %v380, %v418
    %v430 = vmul.f32 %v386, %v422
    %431 = vset.pattern.permute.xlu0 1
    %432 = vperm.xlu0 %431, %v44
    %v433 = vpop.permute.xlu0 %432
    %435 = vset.pattern.permute.xlu0 1
    %436 = vperm.xlu0 %435, %v45
    %v437 = vpop.permute.xlu0 %436
    %v439 = vmul.f32 %v433, %v354
    %v440 = vmul.f32 %v433, %v355
    %v441 = vmul.f32 %v433, %v356
    %v442 = vmul.f32 %v433, %v357
    %v443 = vmul.f32 %v437, %v358
    %v444 = vmul.f32 %v437, %v359
    %v445 = vmul.f32 %v437, %v360
    %v446 = vmul.f32 %v437, %v361
    %447 = vset.pattern.permute.xlu0 2
    %448 = vperm.xlu0 %447, %v44
    %v449 = vpop.permute.xlu0 %448
    %451 = vset.pattern.permute.xlu0 2
    %452 = vperm.xlu0 %451, %v45
    %v453 = vpop.permute.xlu0 %452
    %v455 = vmul.f32 %v449, %v242
    %v456 = vmul.f32 %v449, %v244
    %v457 = vmul.f32 %v449, %v285
    %v458 = vmul.f32 %v449, %v287
    %v459 = vmul.f32 %v453, %v246
    %v460 = vmul.f32 %v453, %v248
    %v461 = vmul.f32 %v453, %v289
    %v462 = vmul.f32 %v453, %v291
    %v463 = vadd.f32 %v439, %v455
    %v464 = vadd.f32 %v440, %v456
    %v465 = vadd.f32 %v441, %v457
    %v466 = vadd.f32 %v442, %v458
    %v467 = vadd.f32 %v443, %v459
    %v468 = vadd.f32 %v444, %v460
    %v469 = vadd.f32 %v445, %v461
    %v470 = vadd.f32 %v446, %v462
    %471 = vset.pattern.permute.xlu0 3
    %472 = vperm.xlu0 %471, %v44
    %v473 = vpop.permute.xlu0 %472
    %475 = vset.pattern.permute.xlu0 3
    %476 = vperm.xlu0 %475, %v45
    %v477 = vpop.permute.xlu0 %476
    %v479 = vmul.f32 %v473, %v423
    %v480 = vmul.f32 %v473, %v424
    %v481 = vmul.f32 %v473, %v425
    %v482 = vmul.f32 %v473, %v426
    %v483 = vmul.f32 %v477, %v427
    %v484 = vmul.f32 %v477, %v428
    %v485 = vmul.f32 %v477, %v429
    %v486 = vmul.f32 %v477, %v430
    %v487 = vadd.f32 %v463, %v479
    %v488 = vadd.f32 %v464, %v480
    %v489 = vadd.f32 %v465, %v481
    %v490 = vadd.f32 %v466, %v482
    %v491 = vadd.f32 %v467, %v483
    %v492 = vadd.f32 %v468, %v484
    %v493 = vadd.f32 %v469, %v485
    %v494 = vadd.f32 %v470, %v486
    %495 = vset.pattern.permute.xlu0 4
    %496 = vperm.xlu0 %495, %v44
    %v497 = vpop.permute.xlu0 %496
    %499 = vset.pattern.permute.xlu0 4
    %500 = vperm.xlu0 %499, %v45
    %v501 = vpop.permute.xlu0 %500
    %v503 = vadd.f32 %v487, %v497
    %v504 = vadd.f32 %v488, %v497
    %v505 = vadd.f32 %v489, %v497
    %v506 = vadd.f32 %v490, %v497
    %v507 = vadd.f32 %v491, %v501
    %v508 = vadd.f32 %v492, %v501
    %v509 = vadd.f32 %v493, %v501
    %v510 = vadd.f32 %v494, %v501
    %v511 = vmax.f32 %v503, 0.0
    %v512 = vmax.f32 %v504, 0.0
    %v513 = vmax.f32 %v505, 0.0
    %v514 = vmax.f32 %v506, 0.0
    %v515 = vmax.f32 %v507, 0.0
    %v516 = vmax.f32 %v508, 0.0
    %v517 = vmax.f32 %v509, 0.0
    %v518 = vmax.f32 %v510, 0.0
    %v519 = vmin.f32 %v511, 6.0
    %v520 = vmin.f32 %v512, 6.0
    %v521 = vmin.f32 %v513, 6.0
    %v522 = vmin.f32 %v514, 6.0
    %v523 = vmin.f32 %v515, 6.0
    %v524 = vmin.f32 %v516, 6.0
    %v525 = vmin.f32 %v517, 6.0
    %v526 = vmin.f32 %v518, 6.0
    %527 = vst [vmem:[#allocation5] sm:$0xff] %v519
    %528 = vst [vmem:[#allocation5 + $0x8] sm:$0xff] %v520
    %529 = vst [vmem:[#allocation5 + $0x10] sm:$0xff] %v523
    %530 = vst [vmem:[#allocation5 + $0x18] sm:$0xff] %v524
    %s531 = scalar_lea.vmem [#allocation5], 32
    %532 = vst [vmem:[%s531] sm:$0xff] %v521
    %533 = vst [vmem:[%s531 + $0x8] sm:$0xff] %v522
    %534 = vst [vmem:[%s531 + $0x10] sm:$0xff] %v525
    %535 = vst [vmem:[%s531 + $0x18] sm:$0xff] %v526
    // Predicated region
    $region22: #{tpu_custom_call.1} parent=1 // pred_check
      _
    $region23: #{tpu_custom_call.1} parent=1 // pred_check_branch
      %537 = sbr.rel (0) target = $region25
    $region24: #{tpu_custom_call.1} parent=1 // pred_region
      %s539 = ssub.s32 1024, 1024
      %540 = vsyncadd [#allocation4], %s539
      %s541 = sshll.u32 [#allocation5], 4
      %s542 = int_to_ptr.vmem [resolvable:$true] %s541
      %547 = dma.vmem_to_hbm [thread:$0]  %s542, 1024, %s4, [#allocation4], 256, 256, 16
    $region25: #{tpu_custom_call.1} parent=1 // pred_fallthru
      _
    // Predicated region
    $region26: #{tpu_custom_call.1} parent=1 // pred_check
      _
    $region27: #{tpu_custom_call.1} parent=1 // pred_check_branch
      %549 = sbr.rel (0) target = $region29
    $region28: #{tpu_custom_call.1} parent=1 // pred_region
      %550 = dma.done [#allocation4], 1024
    $region29: #{tpu_custom_call.1} parent=1 // pred_fallthru
      _
    %551 = vsyncpa [#allocation3], 1
    %552 = vsyncpa [#allocation4], 1

</llo_original>
